<compile_context>
chip_gen: v7x
topology: tpu7x:2x2x1
jax: 0.10.0
libtpu: 0.0.40
codegen_flags: <defaults>
</compile_context>

<pallas_src>
import functools

import jax
import jax.numpy as jnp
from jax.experimental import pallas as pl
from jax.experimental.pallas import tpu as pltpu


def graph_conv_kernel(feat_ref, adj_ref, w_ref, b_ref, out_ref, *, node_tile):
    """One grid step: one node-row tile of one batch element.

    feat_ref : (1, N, Din)        all node features for batch b
    adj_ref  : (TN, N)            row-normalized adjacency strip for node tile n
    w_ref    : (2*Din, Dout_pad)  fused [W ; W_self] weight
    b_ref    : (1, Dout_pad)      fused bias (b + b_self), f32
    out_ref  : (1, TN, Dout_pad)
    """
    x = feat_ref[0]                                      # (N, Din)

    # Aggregate in the narrow Din space: (TN, N) @ (N, Din) on the MXU.
    ax = jnp.dot(adj_ref[...], x, preferred_element_type=jnp.float32)

    # Rows of this node tile (for the self layer).
    row0 = pl.multiple_of(pl.program_id(0) * node_tile, node_tile)
    x_tile = feat_ref[0, pl.ds(row0, node_tile), :]      # (TN, Din)

    # One fused feature matmul with K = 2*Din; f32 accumulation, bias in f32.
    z = jnp.concatenate([ax.astype(x_tile.dtype), x_tile], axis=-1)
    out = jnp.dot(z, w_ref[...], preferred_element_type=jnp.float32) + b_ref[...]

    out_ref[0] = out.astype(out_ref.dtype)


def _pick_node_tile(n, cap):
    """Largest node-row tile <= cap that divides n (multiple of 8 when tiling)."""
    if n <= cap:
        return n
    t = (cap // 8) * 8
    while t >= 8:
        if n % t == 0:
            return t
        t -= 8
    return n  # no aligned divisor: fall back to a single full-N strip


def graph_conv(node_feat, adj, w, b, w_self, b_self, *, normalize_adj=True,
               compute_dtype=None, node_tile_cap=256):
    """node_feat: (B, N, Din); adj: (N, N); w/w_self: (Din, Dout); b/b_self: (Dout,).

    If normalize_adj=False the adjacency must already be row-normalized
    (rows summing to 1), matching the documented kaolin usage
    `adj = normalize_adj(adj); model(x, adj, normalize_adj=False)`.
    """
    B, N, Din = node_feat.shape
    Dout = w.shape[1]
    out_dtype = node_feat.dtype
    if compute_dtype is None:
        compute_dtype = node_feat.dtype

    # ---- batch-invariant preprocessing: done once, outside the grid ----------
    if normalize_adj:
        # D^{-1} A, exactly like the PyTorch dense path (no epsilon added,
        # so zero-degree nodes produce inf/NaN just like the reference module).
        adj = adj / jnp.sum(adj, axis=1, keepdims=True)

    # Fused weight [W ; W_self] -> (2*Din, Dout) and fused bias (b + b_self).
    w_cat = jnp.concatenate([w, w_self], axis=0)
    b_cat = (b + b_self).reshape(1, Dout).astype(jnp.float32)

    # Lane-dense output: pad Dout up to a multiple of 128; sliced off below.
    d_pad = ((Dout + 127) // 128) * 128
    if d_pad != Dout:
        w_cat = jnp.pad(w_cat, ((0, 0), (0, d_pad - Dout)))
        b_cat = jnp.pad(b_cat, ((0, 0), (0, d_pad - Dout)))

    feat_c = node_feat.astype(compute_dtype)
    adj_c = adj.astype(compute_dtype)
    w_cat = w_cat.astype(compute_dtype)

    tn = _pick_node_tile(N, node_tile_cap)
    num_tiles = N // tn
    # TODO(synk): for N where a (tn, N) adjacency strip no longer fits VMEM,
    # also tile the N contraction with a third ("arbitrary") grid axis and a
    # VMEM accumulator.

    kernel = functools.partial(graph_conv_kernel, node_tile=tn)

    out = pl.pallas_call(
        kernel,
        out_shape=jax.ShapeDtypeStruct((B, N, d_pad), out_dtype),
        grid_spec=pltpu.PrefetchScalarGridSpec(
            num_scalar_prefetch=0,
            # batch innermost ("arbitrary"): the adjacency strip for node tile
            # n stays resident in VMEM across all B batch elements.
            grid=(num_tiles, B),
            in_specs=[
                pl.BlockSpec((1, N, Din), lambda n, b: (b, 0, 0)),     # features
                pl.BlockSpec((tn, N), lambda n, b: (n, 0)),            # A_norm strip
                pl.BlockSpec((2 * Din, d_pad), lambda n, b: (0, 0)),   # [W ; W_self]
                pl.BlockSpec((1, d_pad), lambda n, b: (0, 0)),         # fused bias
            ],
            out_specs=pl.BlockSpec((1, tn, d_pad), lambda n, b: (b, n, 0)),
        ),
        compiler_params=pltpu.CompilerParams(
            dimension_semantics=("parallel", "arbitrary"),
            vmem_limit_bytes=48 * 1024 * 1024,  # headroom under v7x's 64 MiB VMEM
        ),
    )(feat_c, adj_c, w_cat, b_cat)

    if d_pad != Dout:
        out = out[..., :Dout]
    return out


def graph_conv_ref(node_feat, adj, w, b, w_self, b_self):
    """Plain-JAX reference mirroring the PyTorch dense path (normalize_adj=True)."""
    norm = jnp.sum(adj, axis=1, keepdims=True)
    h = node_feat @ w + b
    agg = jnp.einsum("nm,bmd->bnd", adj, h) / norm
    return agg + (node_feat @ w_self + b_self)


def xavier_uniform(key, fan_out, fan_in, dtype=jnp.float32):
    # matches torch.nn.init.xavier_uniform_ for a (fan_out, fan_in) weight
    limit = (6.0 / (fan_in + fan_out)) ** 0.5
    return jax.random.uniform(key, (fan_out, fan_in), dtype, minval=-limit, maxval=limit)


if __name__ == "__main__":
    # Small shapes consistent with GraphConv: batch=2, num_nodes=16,
    # input_dim=32, output_dim=64.
    B, N, Din, Dout = 2, 16, 32, 64
    key = jax.random.PRNGKey(0)
    k_feat, k_adj, k_w, k_b, k_ws, k_bs = jax.random.split(key, 6)

    node_feat = jax.random.normal(k_feat, (B, N, Din), jnp.float32)

    # Dense adjacency, no self-loops (self_layer=True), strictly positive
    # off-diagonal weights so every row sum (degree) is > 0.
    adj = jax.random.uniform(k_adj, (N, N), jnp.float32, minval=0.1, maxval=1.0)
    adj = adj * (1.0 - jnp.eye(N, dtype=jnp.float32))

    # Parameter init mirroring GraphConv.initialize(): xavier_uniform weights,
    # uniform(-1, 1) biases.  nn.Linear stores (Dout, Din); pre-transpose.
    w_t = xavier_uniform(k_w, Dout, Din)
    b = jax.random.uniform(k_b, (Dout,), jnp.float32, minval=-1.0, maxval=1.0)
    ws_t = xavier_uniform(k_ws, Dout, Din)
    bs = jax.random.uniform(k_bs, (Dout,), jnp.float32, minval=-1.0, maxval=1.0)
    w, w_self = w_t.T, ws_t.T

    ref = graph_conv_ref(node_feat, adj, w, b, w_self, bs)

    # f32 path: matches the PyTorch module numerics.
    out = graph_conv(node_feat, adj, w, b, w_self, bs)
    out = jax.block_until_ready(out)
    assert out.shape == (B, N, Dout)
    assert jnp.allclose(out, ref, atol=1e-4, rtol=1e-4), "f32 kernel mismatch vs reference"

    # bf16-compute path (half the DMA bytes, bf16-native MXU); f32 accumulation,
    # so tolerance is loosened accordingly.
    out_bf16 = graph_conv(node_feat, adj, w, b, w_self, bs, compute_dtype=jnp.bfloat16)
    out_bf16 = jax.block_until_ready(out_bf16)
    assert jnp.allclose(out_bf16, ref, atol=1e-1, rtol=1e-1), "bf16 kernel mismatch vs reference"

    print("KERNEL_OK")
</pallas_src>

<mosaic_0001>
module attributes {stable_mosaic.version = 11 : i64} {
  func.func @graph_conv_kernel(%arg0: i32, %arg1: i32, %arg2: memref<1x16x32xf32, #tpu.memory_space<vmem>>, %arg3: memref<16x16xf32, #tpu.memory_space<vmem>>, %arg4: memref<64x128xf32, #tpu.memory_space<vmem>>, %arg5: memref<1x128xf32, #tpu.memory_space<vmem>>, %arg6: memref<1x16x128xf32, #tpu.memory_space<vmem>>) attributes {dimension_semantics = [#tpu.dimension_semantics<parallel>, #tpu.dimension_semantics<arbitrary>], iteration_bounds = array<i64: 1, 2>, scalar_prefetch = 0 : i64, scratch_operands = 0 : i64, tpu.core_type = #tpu.core_type<tc>, window_params = [{transform_indices = @transform_0, window_bounds = array<i64: 1, 16, 32>}, {transform_indices = @transform_1, window_bounds = array<i64: 16, 16>}, {pipeline_mode = #tpu.pipeline_mode<synchronous>, transform_indices = @transform_2, window_bounds = array<i64: 64, 128>}, {pipeline_mode = #tpu.pipeline_mode<synchronous>, transform_indices = @transform_3, window_bounds = array<i64: 1, 128>}, {transform_indices = @transform_4, window_bounds = array<i64: 1, 16, 128>}]} {
    %c0 = arith.constant 0 : index
    %c0_0 = arith.constant 0 : index
    %c0_1 = arith.constant 0 : index
    %0 = vector.load %arg2[%c0, %c0_0, %c0_1] : memref<1x16x32xf32, #tpu.memory_space<vmem>>, vector<1x16x32xf32>
    %1 = vector.shape_cast %0 : vector<1x16x32xf32> to vector<16x32xf32>
    %c0_2 = arith.constant 0 : index
    %c0_3 = arith.constant 0 : index
    %2 = vector.load %arg3[%c0_2, %c0_3] : memref<16x16xf32, #tpu.memory_space<vmem>>, vector<16x16xf32>
    %cst = arith.constant dense<0.000000e+00> : vector<16x32xf32>
    %3 = tpu.matmul %2, %1, %cst {dimension_numbers = #tpu.dot_dimension_numbers<[1], [0], [0], [1], [0, 0, 1, 1], [], []>} : vector<16x16xf32>, vector<16x32xf32>, vector<16x32xf32> -> vector<16x32xf32>
    %c16_i32 = arith.constant 16 : i32
    %4 = arith.muli %arg0, %c16_i32 : i32
    %5 = tpu.assume_multiple %4, 16 : i32
    %c0_4 = arith.constant 0 : index
    %6 = arith.index_cast %5 : i32 to index
    %c0_5 = arith.constant 0 : index
    %7 = vector.load %arg2[%c0_4, %6, %c0_5] : memref<1x16x32xf32, #tpu.memory_space<vmem>>, vector<1x16x32xf32>
    %8 = vector.shape_cast %7 : vector<1x16x32xf32> to vector<16x32xf32>
    %9 = tpu.concatenate %3, %8 in 1 : vector<16x32xf32>, vector<16x32xf32> -> vector<16x64xf32>
    %c0_6 = arith.constant 0 : index
    %c0_7 = arith.constant 0 : index
    %10 = vector.load %arg4[%c0_6, %c0_7] : memref<64x128xf32, #tpu.memory_space<vmem>>, vector<64x128xf32>
    %cst_8 = arith.constant dense<0.000000e+00> : vector<16x128xf32>
    %11 = tpu.matmul %9, %10, %cst_8 {dimension_numbers = #tpu.dot_dimension_numbers<[1], [0], [0], [1], [0, 0, 1, 1], [], []>} : vector<16x64xf32>, vector<64x128xf32>, vector<16x128xf32> -> vector<16x128xf32>
    %c0_9 = arith.constant 0 : index
    %c0_10 = arith.constant 0 : index
    %12 = vector.load %arg5[%c0_9, %c0_10] : memref<1x128xf32, #tpu.memory_space<vmem>>, vector<1x128xf32>
    %13 = vector.broadcast %12 : vector<1x128xf32> to vector<16x128xf32>
    %14 = arith.addf %11, %13 : vector<16x128xf32>
    %c0_11 = arith.constant 0 : index
    %c0_12 = arith.constant 0 : index
    %c0_13 = arith.constant 0 : index
    %15 = vector.load %arg6[%c0_11, %c0_12, %c0_13] : memref<1x16x128xf32, #tpu.memory_space<vmem>>, vector<1x16x128xf32>
    %16 = vector.shape_cast %15 : vector<1x16x128xf32> to vector<16x128xf32>
    %17 = vector.shape_cast %14 : vector<16x128xf32> to vector<1x16x128xf32>
    tpu.vector_store %arg6[%c0_11, %c0_12, %c0_13], %17 {strides = array<i32>} : memref<1x16x128xf32, #tpu.memory_space<vmem>>, vector<1x16x128xf32>,
    return
  }
  func.func @transform_0(%arg0: i32, %arg1: i32) -> (i32, i32, i32) {
    %c0_i32 = arith.constant 0 : i32
    %c0_i32_0 = arith.constant 0 : i32
    %c0_i32_1 = arith.constant 0 : i32
    return %arg1, %c0_i32, %c0_i32_0 : i32, i32, i32
  }
  func.func @transform_1(%arg0: i32, %arg1: i32) -> (i32, i32) {
    %c0_i32 = arith.constant 0 : i32
    %c0_i32_0 = arith.constant 0 : i32
    return %arg0, %c0_i32 : i32, i32
  }
  func.func @transform_2(%arg0: i32, %arg1: i32) -> (i32, i32) {
    %c0_i32 = arith.constant 0 : i32
    %c0_i32_0 = arith.constant 0 : i32
    %c0_i32_1 = arith.constant 0 : i32
    return %c0_i32, %c0_i32_0 : i32, i32
  }
  func.func @transform_3(%arg0: i32, %arg1: i32) -> (i32, i32) {
    %c0_i32 = arith.constant 0 : i32
    %c0_i32_0 = arith.constant 0 : i32
    %c0_i32_1 = arith.constant 0 : i32
    return %c0_i32, %c0_i32_0 : i32, i32
  }
  func.func @transform_4(%arg0: i32, %arg1: i32) -> (i32, i32, i32) {
    %c0_i32 = arith.constant 0 : i32
    %c0_i32_0 = arith.constant 0 : i32
    return %arg1, %arg0, %c0_i32 : i32, i32, i32
  }
}

</mosaic_0001>

<llo_original>
// kernel: tpu_custom_call.1
$region0: #{tpu_custom_call.1}
  #allocation0 [shape = 'u32[]', space=smem, size = 0x4, offset = 0x4, fixed_abs, tag = 'smem constant byte address 0x4 - core index']
  #allocation1 [shape = 'u32[144,128]{1,0:T(1,128)}', space=vmem, size = 0x12000, scoped, tag = 'internal scratch']
  %s0 = inlined_call_operand.hbm [shape: f32[2,16,32], index: 0, kind: input, shape index: {}]
  %s1 = inlined_call_operand.hbm [shape: f32[16,16], index: 1, kind: input, shape index: {}]
  %s2 = inlined_call_operand.hbm [shape: f32[64,128], index: 2, kind: input, shape index: {}]
  %s3 = inlined_call_operand.vmem [shape: f32[1,128], index: 3, kind: input, shape index: {}]
  %s4 = inlined_call_operand.hbm [shape: f32[2,16,128], index: 4, kind: output, shape index: {}]
  %s5 = sld [smem:[#allocation0]]
  $region61: #{tpu_custom_call.1} parent=0
    _
  %s7 = ssub.s32 1, %s5
  %s8 = scalar_select 0, %s7, %s5
  $region1: #{tpu_custom_call.1} parent=0
    #allocation2 [shape = 'u8[16384]{0}', space=vmem, size = 0x4000, scoped, tag = 'input window, operand 0']
    #allocation3 [shape = 's32[2]{0}', space=sflag, size = 0x8, scoped, tag = 'scoped memory for tpu_custom_call.1']
    #allocation4 [shape = 's32[2]{0}', space=sflag, size = 0x8, scoped, tag = 'scoped memory for tpu_custom_call.1']
    #allocation5 [shape = 'u8[8192]{0}', space=vmem, size = 0x2000, scoped, tag = 'input window, operand 1, single buffered']
    #allocation6 [shape = 's32[1]{0}', space=sflag, size = 0x4, scoped, tag = 'scoped memory for tpu_custom_call.1']
    #allocation7 [shape = 'u8[32768]{0}', space=vmem, size = 0x8000, scoped, tag = 'input window, operand 2, single buffered']
    #allocation8 [shape = 'u8[16384]{0}', space=vmem, size = 0x4000, scoped, tag = 'output window, operand 0']
    %9 = vsyncpa [#allocation3], 0
    %s10 = scalar_lea.sflag [#allocation3], 1
    %11 = vsyncpa %s10, 0
    %12 = vsyncpa [#allocation6], 0
    %13 = vsyncpa [#allocation4], 0
    %s14 = scalar_lea.sflag [#allocation4], 1
    %15 = vsyncpa %s14, 0
    loop: start=0, step=1, limit=4
    $region2: #{tpu_custom_call.1} parent=1 // loop_pre_header
      _
    $region3: #{tpu_custom_call.1} parent=1 // loop_header
      %s17 = sphi 0, %s21
      %p18 = scmp.ge.s32.totalorder %s17, 4
      %s24 = sphi 0, %s36
      %s25 = sphi 0, %s32
      %s26 = sphi 0, %s24
      %s27 = sphi 0, %s25
      %s28 = sphi 0, %s26
      %s29 = sphi 0, %s27
      %s39 = sphi 0, %s41
      %s42 = sphi 0, %s39
      %s43 = sphi 0, %s42
      %s59 = sphi 0, %s43
      %s65 = sphi 0, %s67
      %s68 = sphi 0, %s65
      %s69 = sphi 0, %s68
      %s85 = sphi 0, %s69
      %s89 = sphi 0, %s89
      %s91 = sphi 0, %s89
      %s92 = sphi 0, %s91
      %s106 = sphi 0, %s92
      %s110 = sphi 0, %s110
      %s112 = sphi 0, %s110
      %s113 = sphi 0, %s112
      %s127 = sphi 0, %s113
      %s135 = sphi 0, %s137
      %s138 = sphi 0, %s135
      %s139 = sphi 0, %s138
      %s155 = sphi 0, %s139
    $region4: #{tpu_custom_call.1} parent=1 // loop_header_branch
      %20 = sbr.rel (%p18) target = $region8
    $region5: #{tpu_custom_call.1} parent=1 // loop_body
      %s22 = ssub.s32 %s17, 1
      %s23 = ssub.s32 %s17, 2
      %s30 = sadd.s32 1, %s25
      %p31 = scmp.ge.s32.totalorder %s30, 2
      %s32 = scalar_select %p31, 0, %s30
      %s33 = sadd.s32 1, %s24
      %s34 = scalar_select %p31, %s33, %s24
      %p35 = scmp.ge.s32.totalorder %s34, 1
      %s36 = scalar_select %p35, 0, %s34
      %s37 = ssub.s32 %s25, %s32
      %p38 = scmp.eq.s32.totalorder %s37, 0
      %s40 = sadd.s32 %s39, 1
      %s41 = scalar_select %p38, %s39, %s40
      %p44 = pneg %p38
      %p45 = scmp.eq.s32.totalorder %s17, 1
      %p46 = por %p44, %p45
      %p47 = scmp.ne.s32.totalorder %s39, %s42
      %p48 = scmp.eq.s32.totalorder %s17, 0
      %p49 = por %p47, %p48
      %p50 = scmp.ne.s32.totalorder %s39, %s42
      %p51 = scmp.eq.s32.totalorder %s22, 1
      %p52 = por %p50, %p51
      %p53 = scmp.ne.s32.totalorder %s42, %s43
      %p54 = scmp.eq.s32.totalorder %s22, 0
      %p55 = por %p53, %p54
      %p56 = scmp.ne.s32.totalorder %s42, %s43
      %p57 = scmp.eq.s32.totalorder %s23, 1
      %p58 = por %p56, %p57
      %p60 = scmp.ne.s32.totalorder %s43, %s59
      %p61 = scmp.eq.s32.totalorder %s23, 0
      %p62 = por %p60, %p61
      %s63 = ssub.s32 %s24, %s36
      %p64 = scmp.eq.s32.totalorder %s63, 0
      %s66 = sadd.s32 %s65, 1
      %s67 = scalar_select %p64, %s65, %s66
      %p70 = pneg %p64
      %p71 = scmp.eq.s32.totalorder %s17, 1
      %p72 = por %p70, %p71
      %p73 = scmp.ne.s32.totalorder %s65, %s68
      %p74 = scmp.eq.s32.totalorder %s17, 0
      %p75 = por %p73, %p74
      %p76 = scmp.ne.s32.totalorder %s65, %s68
      %p77 = scmp.eq.s32.totalorder %s22, 1
      %p78 = por %p76, %p77
      %p79 = scmp.ne.s32.totalorder %s68, %s69
      %p80 = scmp.eq.s32.totalorder %s22, 0
      %p81 = por %p79, %p80
      %p82 = scmp.ne.s32.totalorder %s68, %s69
      %p83 = scmp.eq.s32.totalorder %s23, 1
      %p84 = por %p82, %p83
      %p86 = scmp.ne.s32.totalorder %s69, %s85
      %p87 = scmp.eq.s32.totalorder %s23, 0
      %p88 = por %p86, %p87
      %s90 = sadd.s32 %s89, 1
      %p93 = scmp.eq.s32.totalorder %s17, 1
      %p94 = scmp.ne.s32.totalorder %s89, %s91
      %p95 = scmp.eq.s32.totalorder %s17, 0
      %p96 = por %p94, %p95
      %p97 = scmp.ne.s32.totalorder %s89, %s91
      %p98 = scmp.eq.s32.totalorder %s22, 1
      %p99 = por %p97, %p98
      %p100 = scmp.ne.s32.totalorder %s91, %s92
      %p101 = scmp.eq.s32.totalorder %s22, 0
      %p102 = por %p100, %p101
      %p103 = scmp.ne.s32.totalorder %s91, %s92
      %p104 = scmp.eq.s32.totalorder %s23, 1
      %p105 = por %p103, %p104
      %p107 = scmp.ne.s32.totalorder %s92, %s106
      %p108 = scmp.eq.s32.totalorder %s23, 0
      %p109 = por %p107, %p108
      %s111 = sadd.s32 %s110, 1
      %p114 = scmp.eq.s32.totalorder %s17, 1
      %p115 = scmp.ne.s32.totalorder %s110, %s112
      %p116 = scmp.eq.s32.totalorder %s17, 0
      %p117 = por %p115, %p116
      %p118 = scmp.ne.s32.totalorder %s110, %s112
      %p119 = scmp.eq.s32.totalorder %s22, 1
      %p120 = por %p118, %p119
      %p121 = scmp.ne.s32.totalorder %s112, %s113
      %p122 = scmp.eq.s32.totalorder %s22, 0
      %p123 = por %p121, %p122
      %p124 = scmp.ne.s32.totalorder %s112, %s113
      %p125 = scmp.eq.s32.totalorder %s23, 1
      %p126 = por %p124, %p125
      %p128 = scmp.ne.s32.totalorder %s113, %s127
      %p129 = scmp.eq.s32.totalorder %s23, 0
      %p130 = por %p128, %p129
      %s131 = ssub.s32 %s25, %s32
      %s132 = ssub.s32 %s24, %s36
      %s133 = sor.u32 %s131, %s132
      %p134 = scmp.eq.s32.totalorder %s133, 0
      %s136 = sadd.s32 %s135, 1
      %s137 = scalar_select %p134, %s135, %s136
      %p140 = pneg %p134
      %p141 = scmp.eq.s32.totalorder %s17, 1
      %p142 = por %p140, %p141
      %p143 = scmp.ne.s32.totalorder %s135, %s138
      %p144 = scmp.eq.s32.totalorder %s17, 0
      %p145 = por %p143, %p144
      %p146 = scmp.ne.s32.totalorder %s135, %s138
      %p147 = scmp.eq.s32.totalorder %s22, 1
      %p148 = por %p146, %p147
      %p149 = scmp.ne.s32.totalorder %s138, %s139
      %p150 = scmp.eq.s32.totalorder %s22, 0
      %p151 = por %p149, %p150
      %p152 = scmp.ne.s32.totalorder %s138, %s139
      %p153 = scmp.eq.s32.totalorder %s23, 1
      %p154 = por %p152, %p153
      %p156 = scmp.ne.s32.totalorder %s139, %s155
      %p157 = scmp.eq.s32.totalorder %s23, 0
      %p158 = por %p156, %p157
      %p159 = scmp.le.s32.totalorder 1, %s17
      %p160 = scmp.lt.s32.totalorder %s17, 3
      %p161 = pnand %p159, %p160
      %p162 = pneg %p161
      // Predicated region
      $region9: #{tpu_custom_call.1} parent=5 // pred_check
        _
      $region10: #{tpu_custom_call.1} parent=5 // pred_check_branch
        %164 = sbr.rel (%p161) target = $region12
      $region11: #{tpu_custom_call.1} parent=5 // pred_region
        %s165 = ssub.s32 %s17, 1
        // Predicated region
        $region13: #{tpu_custom_call.1} parent=11 // pred_check
          %p166 = pneg %p81
        $region14: #{tpu_custom_call.1} parent=11 // pred_check_branch
          %168 = sbr.rel (%p166) target = $region16
        $region15: #{tpu_custom_call.1} parent=11 // pred_region
          %s169 = smul.u32 2, %s26
          %s171 = ssub.s32 256, 256
          %172 = vsyncadd [#allocation6], %s171
          %s173 = smul.addr %s169, 128
          %s174 = scalar_lea.hbm %s1, %s173
          %s175 = sshll.u32 [#allocation5], 4
          %s176 = int_to_ptr.vmem [resolvable:$true] %s175
          %181 = dma.hbm_to_vmem [thread:$0]  %s174, 256, %s176, [#allocation6], 128, 128, 8
        $region16: #{tpu_custom_call.1} parent=11 // pred_fallthru
          _
        // Predicated region
        $region17: #{tpu_custom_call.1} parent=11 // pred_check
          %p182 = pneg %p102
        $region18: #{tpu_custom_call.1} parent=11 // pred_check_branch
          %184 = sbr.rel (%p182) target = $region20
        $region19: #{tpu_custom_call.1} parent=11 // pred_region
          %s186 = ssub.s32 1024, 1024
          %187 = vsyncadd [#allocation6], %s186
          %s188 = sshll.u32 [#allocation7], 4
          %s189 = int_to_ptr.vmem [resolvable:$true] %s188
          %194 = dma.hbm_to_vmem [thread:$0]  %s2, 1024, %s189, [#allocation6], 128, 128, 8
        $region20: #{tpu_custom_call.1} parent=11 // pred_fallthru
          _
        // Predicated region
        $region21: #{tpu_custom_call.1} parent=11 // pred_check
          %p195 = pneg %p123
        $region22: #{tpu_custom_call.1} parent=11 // pred_check_branch
          %197 = sbr.rel (%p195) target = $region24
        $region23: #{tpu_custom_call.1} parent=11 // pred_region
          _
        $region24: #{tpu_custom_call.1} parent=11 // pred_fallthru
          _
      $region12: #{tpu_custom_call.1} parent=5 // pred_fallthru
        _
      %p198 = scmp.lt.s32.totalorder %s17, 2
      // Predicated region
      $region25: #{tpu_custom_call.1} parent=5 // pred_check
        %p199 = pneg %p198
      $region26: #{tpu_custom_call.1} parent=5 // pred_check_branch
        %201 = sbr.rel (%p199) target = $region28
      $region27: #{tpu_custom_call.1} parent=5 // pred_region
        // Predicated region
        $region29: #{tpu_custom_call.1} parent=27 // pred_check
          %p202 = pneg %p49
        $region30: #{tpu_custom_call.1} parent=27 // pred_check_branch
          %204 = sbr.rel (%p202) target = $region32
        $region31: #{tpu_custom_call.1} parent=27 // pred_region
          %s205 = sand.u32 %s39, 1
          %s206 = scalar_lea.sflag [#allocation3], %s205
          %s207 = sand.u32 %s39, 1
          %s208 = smul.addr %s207, 16
          %s209 = scalar_lea.vmem [#allocation2], %s208
          %s211 = ssub.s32 256, 256
          %212 = vsyncadd %s206, %s211
          %s213 = smul.addr %s25, 2
          %s214 = smul.addr %s213, 128
          %s215 = scalar_lea.hbm %s0, %s214
          %s216 = sshll.u32 %s209, 4
          %s217 = int_to_ptr.vmem [resolvable:$true] %s216
          %222 = dma.hbm_to_vmem [thread:$0]  %s215, 256, %s217, %s206, 128, 128, 8
        $region32: #{tpu_custom_call.1} parent=27 // pred_fallthru
          _
      $region28: #{tpu_custom_call.1} parent=5 // pred_fallthru
        _
      %p223 = scmp.le.s32.totalorder 1, %s17
      %p224 = scmp.lt.s32.totalorder %s17, 3
      %p225 = pnand %p223, %p224
      %p226 = pneg %p225
      // Predicated region
      $region33: #{tpu_custom_call.1} parent=5 // pred_check
        _
      $region34: #{tpu_custom_call.1} parent=5 // pred_check_branch
        %228 = sbr.rel (%p225) target = $region36
      $region35: #{tpu_custom_call.1} parent=5 // pred_region
        %s229 = ssub.s32 %s17, 1
        %s230 = sand.u32 %s42, 1
        %s231 = scalar_lea.sflag [#allocation3], %s230
        %s232 = sand.u32 %s42, 1
        %s233 = smul.addr %s232, 16
        %s234 = scalar_lea.vmem [#allocation2], %s233
        // Predicated region
        $region37: #{tpu_custom_call.1} parent=35 // pred_check
          %p235 = pneg %p55
        $region38: #{tpu_custom_call.1} parent=35 // pred_check_branch
          %237 = sbr.rel (%p235) target = $region40
        $region39: #{tpu_custom_call.1} parent=35 // pred_region
          %238 = dma.done %s231, 256
        $region40: #{tpu_custom_call.1} parent=35 // pred_fallthru
          _
        // Predicated region
        $region41: #{tpu_custom_call.1} parent=35 // pred_check
          %p239 = pneg %p81
        $region42: #{tpu_custom_call.1} parent=35 // pred_check_branch
          %241 = sbr.rel (%p239) target = $region44
        $region43: #{tpu_custom_call.1} parent=35 // pred_region
          %242 = dma.done [#allocation6], 256
        $region44: #{tpu_custom_call.1} parent=35 // pred_fallthru
          _
        // Predicated region
        $region45: #{tpu_custom_call.1} parent=35 // pred_check
          %p243 = pneg %p102
        $region46: #{tpu_custom_call.1} parent=35 // pred_check_branch
          %245 = sbr.rel (%p243) target = $region48
        $region47: #{tpu_custom_call.1} parent=35 // pred_region
          %246 = dma.done [#allocation6], 1024
        $region48: #{tpu_custom_call.1} parent=35 // pred_fallthru
          _
        %s247 = sand.u32 %s42, 1
        %s248 = scalar_lea.sflag [#allocation3], %s247
        %s249 = sand.u32 %s42, 1
        %s250 = smul.addr %s249, 16
        %s251 = scalar_lea.vmem [#allocation2], %s250
        %p252 = pneg %p55
        %p253 = pneg %p52
        %p254 = pneg %p81
        %p255 = pneg %p78
        %p256 = pneg %p102
        %p257 = pneg %p99
        %p258 = pneg %p123
        %p259 = pneg %p120
        %p260 = pneg %p151
        %p261 = pneg %p148
        %s262 = sand.u32 %s138, 1
        %s263 = scalar_lea.sflag [#allocation4], %s262
        %s264 = sand.u32 %s138, 1
        %s265 = smul.addr %s264, 16
        %s266 = scalar_lea.vmem [#allocation8], %s265
        %s267 = smul.u32 2, %s26
        %s268 = smul.u32 2, %s26
        %v269 = vld [vmem:[%s234] sm:$0xff]
        %v270 = vld [vmem:[%s234 + $0x8] sm:$0xff]
        %v271 = vld [vmem:[#allocation5] sm:$0xff]
        %v272 = vld [vmem:[#allocation5 + $0x8] sm:$0xff]
        %vm273 = vcmask 130048
        %v275 = vsel %vm273, %v271, 0
        %v278 = vsel %vm273, %v272, 0
        %280 = vmatprep.subr.mxu0 0.0
        %281 = vmatpush1.msra.mxu0 %v269
        %282 = vmatprep.subr.mxu0 0.0
        %283 = vmatpush1.msra.mxu0 %v270
        %284 = vmatprep.subr.mxu0 0.0
        %285 = vmatpush1.msra.mxu0 0.0
        %286 = vmatprep.subr.mxu0 0.0
        %287 = vmatpush1.msra.mxu0 0.0
        %288 = vmatprep.subr.mxu0 0.0
        %289 = vmatpush1.msra.mxu0 0.0
        %290 = vmatprep.subr.mxu0 0.0
        %291 = vmatpush1.msra.mxu0 0.0
        %292 = vmatprep.subr.mxu0 0.0
        %293 = vmatpush1.msra.mxu0 0.0
        %294 = vmatprep.subr.mxu0 0.0
        %295 = vmatpush1.msra.mxu0 0.0
        %296 = vmatprep.subr.mxu0 0.0
        %297 = vmatpush1.msra.mxu0 0.0
        %298 = vmatprep.subr.mxu0 0.0
        %299 = vmatpush1.msra.mxu0 0.0
        %300 = vmatprep.subr.mxu0 0.0
        %301 = vmatpush1.msra.mxu0 0.0
        %302 = vmatprep.subr.mxu0 0.0
        %303 = vmatpush1.msra.mxu0 0.0
        %304 = vmatprep.subr.mxu0 0.0
        %305 = vmatpush1.msra.mxu0 0.0
        %306 = vmatprep.subr.mxu0 0.0
        %307 = vmatpush1.msra.mxu0 0.0
        %308 = vmatprep.subr.mxu0 0.0
        %309 = vmatpush1.msra.mxu0 0.0
        %310 = vmatprep.subr.mxu0 0.0
        %311 = vmatpush1.msra.mxu0 0.0
        %312 = vmatprep.subr.mxu0 0.0
        %313 = vmatpush1.msra.mxu0 0.0
        %314 = vmatprep.subr.mxu0 0.0
        %315 = vmatpush1.msra.mxu0 0.0
        %316 = vmatprep.subr.mxu0 0.0
        %317 = vmatpush1.msra.mxu0 0.0
        %318 = vmatprep.subr.mxu0 0.0
        %319 = vmatpush1.msra.mxu0 0.0
        %320 = vmatprep.subr.mxu0 0.0
        %321 = vmatpush1.msra.mxu0 0.0
        %322 = vmatprep.subr.mxu0 0.0
        %323 = vmatpush1.msra.mxu0 0.0
        %324 = vmatprep.subr.mxu0 0.0
        %325 = vmatpush1.msra.mxu0 0.0
        %326 = vmatprep.subr.mxu0 0.0
        %327 = vmatpush1.msra.mxu0 0.0
        %328 = vmatprep.subr.mxu0 0.0
        %329 = vmatpush1.msra.mxu0 0.0
        %330 = vmatprep.subr.mxu0 0.0
        %331 = vmatpush1.msra.mxu0 0.0
        %332 = vmatprep.subr.mxu0 0.0
        %333 = vmatpush1.msra.mxu0 0.0
        %334 = vmatprep.subr.mxu0 0.0
        %335 = vmatpush1.msra.mxu0 0.0
        %336 = vmatprep.subr.mxu0 0.0
        %337 = vmatpush1.msra.mxu0 0.0
        %338 = vmatprep.subr.mxu0 0.0
        %339 = vmatpush1.msra.mxu0 0.0
        %340 = vmatprep.subr.mxu0 0.0
        %341 = vmatpush1.msra.mxu0 0.0
        %342 = vmatprep.subr.mxu0 0.0
        %343 = vmatpush1.msra.mxu0 0.0
        %344 = vmatprep.mubr.f32.mxu0 0.0
        %345 = vmatmul.mubr.f32.gmra.mrb[0].mxu0 %v275
        %v346 = vpop.f32.mrb[0].mxu0
        %v347 = vadd.f32 0.0, %v346
        %v348 = vpop.f32.mrb[0].mxu0
        %349 = vmatprep.mubr.f32.mxu0 0.0
        %350 = vmatmul.mubr.f32.gmra.mrb[0].mxu0 %v278
        %v351 = vpop.f32.mrb[0].mxu0
        %v352 = vadd.f32 0.0, %v351
        %v353 = vpop.f32.mrb[0].mxu0
        %354 = vdwg.mxu0
        %s355 = smul.u32 %s26, 16
        %s356 = scalar_lea.vmem %s234, %s355 [#allocation2]
        %v357 = vld [vmem:[%s356] sm:$0xff]
        %v358 = vld [vmem:[%s356 + $0x8] sm:$0xff]
        %361 = vrot.lane.b32.xlu0 %v357, 32
        %v362 = vpop.permute.xlu0 %361
        %363 = vrot.lane.b32.xlu0 %v358, 32
        %v364 = vpop.permute.xlu0 %363
        %vm367 = vcmask 261120
        %v368 = vsel %vm367, %v347, %v362
        %v369 = vsel %vm367, %v352, %v364
        %v370 = vld [vmem:[#allocation7] sm:$0xff]
        %v371 = vld [vmem:[#allocation7 + $0x8] sm:$0xff]
        %v372 = vld [vmem:[#allocation7 + $0x10] sm:$0xff]
        %v373 = vld [vmem:[#allocation7 + $0x18] sm:$0xff]
        %v374 = vld [vmem:[#allocation7 + $0x20] sm:$0xff]
        %v375 = vld [vmem:[#allocation7 + $0x28] sm:$0xff]
        %v376 = vld [vmem:[#allocation7 + $0x30] sm:$0xff]
        %v377 = vld [vmem:[#allocation7 + $0x38] sm:$0xff]
        %v378 = vld [vmem:[%s3] sm:$0x1]
        %v380 = vlaneseq
        %v381 = vshrl.u32 %v380, 7
        %v382 = vsub.s32 0, %v381
        %v383 = vrot.slane %v378, %v382
        %vm385 = vcmask 523264
        %v387 = vsel %vm385, %v368, 0
        %v390 = vsel %vm385, %v369, 0
        %392 = vmatprep.subr.mxu0 0.0
        %393 = vmatpush1.msra.mxu0 %v370
        %394 = vmatprep.subr.mxu0 0.0
        %395 = vmatpush1.msra.mxu0 %v371
        %396 = vmatprep.subr.mxu0 0.0
        %397 = vmatpush1.msra.mxu0 %v372
        %398 = vmatprep.subr.mxu0 0.0
        %399 = vmatpush1.msra.mxu0 %v373
        %400 = vmatprep.subr.mxu0 0.0
        %401 = vmatpush1.msra.mxu0 %v374
        %402 = vmatprep.subr.mxu0 0.0
        %403 = vmatpush1.msra.mxu0 %v375
        %404 = vmatprep.subr.mxu0 0.0
        %405 = vmatpush1.msra.mxu0 %v376
        %406 = vmatprep.subr.mxu0 0.0
        %407 = vmatpush1.msra.mxu0 %v377
        %408 = vmatprep.subr.mxu0 0.0
        %409 = vmatpush1.msra.mxu0 0.0
        %410 = vmatprep.subr.mxu0 0.0
        %411 = vmatpush1.msra.mxu0 0.0
        %412 = vmatprep.subr.mxu0 0.0
        %413 = vmatpush1.msra.mxu0 0.0
        %414 = vmatprep.subr.mxu0 0.0
        %415 = vmatpush1.msra.mxu0 0.0
        %416 = vmatprep.subr.mxu0 0.0
        %417 = vmatpush1.msra.mxu0 0.0
        %418 = vmatprep.subr.mxu0 0.0
        %419 = vmatpush1.msra.mxu0 0.0
        %420 = vmatprep.subr.mxu0 0.0
        %421 = vmatpush1.msra.mxu0 0.0
        %422 = vmatprep.subr.mxu0 0.0
        %423 = vmatpush1.msra.mxu0 0.0
        %424 = vmatprep.subr.mxu0 0.0
        %425 = vmatpush1.msra.mxu0 0.0
        %426 = vmatprep.subr.mxu0 0.0
        %427 = vmatpush1.msra.mxu0 0.0
        %428 = vmatprep.subr.mxu0 0.0
        %429 = vmatpush1.msra.mxu0 0.0
        %430 = vmatprep.subr.mxu0 0.0
        %431 = vmatpush1.msra.mxu0 0.0
        %432 = vmatprep.subr.mxu0 0.0
        %433 = vmatpush1.msra.mxu0 0.0
        %434 = vmatprep.subr.mxu0 0.0
        %435 = vmatpush1.msra.mxu0 0.0
        %436 = vmatprep.subr.mxu0 0.0
        %437 = vmatpush1.msra.mxu0 0.0
        %438 = vmatprep.subr.mxu0 0.0
        %439 = vmatpush1.msra.mxu0 0.0
        %440 = vmatprep.subr.mxu0 0.0
        %441 = vmatpush1.msra.mxu0 0.0
        %442 = vmatprep.subr.mxu0 0.0
        %443 = vmatpush1.msra.mxu0 0.0
        %444 = vmatprep.subr.mxu0 0.0
        %445 = vmatpush1.msra.mxu0 0.0
        %446 = vmatprep.subr.mxu0 0.0
        %447 = vmatpush1.msra.mxu0 0.0
        %448 = vmatprep.subr.mxu0 0.0
        %449 = vmatpush1.msra.mxu0 0.0
        %450 = vmatprep.subr.mxu0 0.0
        %451 = vmatpush1.msra.mxu0 0.0
        %452 = vmatprep.subr.mxu0 0.0
        %453 = vmatpush1.msra.mxu0 0.0
        %454 = vmatprep.subr.mxu0 0.0
        %455 = vmatpush1.msra.mxu0 0.0
        %456 = vmatprep.mubr.f32.mxu0 0.0
        %457 = vmatmul.mubr.f32.gmra.mrb[0].mxu0 %v387
        %v458 = vpop.f32.mrb[0].mxu0
        %v459 = vadd.f32 %v383, %v458
        %v460 = vpop.f32.mrb[0].mxu0
        %461 = vmatprep.mubr.f32.mxu0 0.0
        %462 = vmatmul.mubr.f32.gmra.mrb[0].mxu0 %v390
        %v463 = vpop.f32.mrb[0].mxu0
        %v464 = vadd.f32 %v383, %v463
        %v465 = vpop.f32.mrb[0].mxu0
        %466 = vdwg.mxu0
        %467 = vst [vmem:[%s266] sm:$0xff] %v459
        %468 = vst [vmem:[%s266 + $0x8] sm:$0xff] %v464
        %s469 = sand.u32 %s138, 1
        %s470 = scalar_lea.sflag [#allocation4], %s469
        %s471 = sand.u32 %s138, 1
        %s472 = smul.addr %s471, 16
        %s473 = scalar_lea.vmem [#allocation8], %s472
        // Predicated region
        $region49: #{tpu_custom_call.1} parent=35 // pred_check
          %p474 = pneg %p148
        $region50: #{tpu_custom_call.1} parent=35 // pred_check_branch
          %476 = sbr.rel (%p474) target = $region52
        $region51: #{tpu_custom_call.1} parent=35 // pred_region
          %s477 = smul.u32 2, %s26
          %s479 = ssub.s32 256, 256
          %480 = vsyncadd %s470, %s479
          %s481 = smul.addr %s27, 2
          %s482 = sadd.s32 %s477, %s481
          %s483 = smul.addr %s482, 128
          %s484 = scalar_lea.hbm %s4, %s483
          %s485 = sshll.u32 %s473, 4
          %s486 = int_to_ptr.vmem [resolvable:$true] %s485
          %491 = dma.vmem_to_hbm [thread:$0]  %s486, 256, %s484, %s470, 128, 128, 8
        $region52: #{tpu_custom_call.1} parent=35 // pred_fallthru
          _
      $region36: #{tpu_custom_call.1} parent=5 // pred_fallthru
        _
      %p492 = scmp.le.s32.totalorder 2, %s17
      // Predicated region
      $region53: #{tpu_custom_call.1} parent=5 // pred_check
        %p493 = pneg %p492
      $region54: #{tpu_custom_call.1} parent=5 // pred_check_branch
        %495 = sbr.rel (%p493) target = $region56
      $region55: #{tpu_custom_call.1} parent=5 // pred_region
        %s496 = ssub.s32 %s17, 2
        // Predicated region
        $region57: #{tpu_custom_call.1} parent=55 // pred_check
          %p497 = pneg %p154
        $region58: #{tpu_custom_call.1} parent=55 // pred_check_branch
          %499 = sbr.rel (%p497) target = $region60
        $region59: #{tpu_custom_call.1} parent=55 // pred_region
          %s500 = sand.u32 %s139, 1
          %s501 = scalar_lea.sflag [#allocation4], %s500
          %s502 = sand.u32 %s139, 1
          %s503 = smul.addr %s502, 16
          %s504 = scalar_lea.vmem [#allocation8], %s503
          %505 = dma.done %s501, 256
        $region60: #{tpu_custom_call.1} parent=55 // pred_fallthru
          _
      $region56: #{tpu_custom_call.1} parent=5 // pred_fallthru
        _
    $region6: #{tpu_custom_call.1} parent=1 // loop_footer
      %s21 = sadd.s32 1, %s17
    $region7: #{tpu_custom_call.1} parent=1 // loop_footer_branch
      %16 = sbr.rel target = $region3
    $region8: #{tpu_custom_call.1} parent=1 // loop_exit
      _
    %506 = vsyncpa [#allocation3], 1
    %s507 = scalar_lea.sflag [#allocation3], 1
    %508 = vsyncpa %s507, 1
    %509 = vsyncpa [#allocation6], 1
    %510 = vsyncpa [#allocation4], 1
    %s511 = scalar_lea.sflag [#allocation4], 1
    %512 = vsyncpa %s511, 1

</llo_original>
